<compile_context>
chip_gen: v7x
topology: tpu7x:2x2x1
jax: 0.10.0
libtpu: 0.0.40
codegen_flags: <defaults>
</compile_context>

<pallas_src>
import jax
import jax.numpy as jnp
from jax.experimental import pallas as pl
from jax.experimental.pallas import tpu as pltpu

EPSILON = 1e-4
MIB = 1024 * 1024


def _cdiv(a, b):
    return -(-a // b)


def _round_up(a, b):
    return _cdiv(a, b) * b


def _vmem_budget_and_limit():
    """Pick a pipeline-buffer byte budget and an explicit scoped-VMEM limit."""
    try:
        cap = int(pltpu.get_tpu_info().vmem_capacity_bytes)
    except Exception:
        cap = 64 * MIB  # conservative: assume a v7x-sized (64 MiB) VMEM
    if cap >= 96 * MIB:
        # v5e / v6e class (128 MiB physical): 32 MiB of buffers, ample headroom.
        budget = 32 * MIB
    else:
        # v7x class (64 MiB physical per core): big blocks, but leave headroom.
        budget = min(36 * MIB, cap // 2 + 4 * MIB)
    limit = min(cap - 8 * MIB, budget + 8 * MIB)
    limit = max(limit, budget)
    return int(budget), int(limit)


def _norm_kernel(x_ref, o_ref):
    """Single-pass kernel: full batch resident in the block, reduce over dim 0."""
    x = jnp.maximum(x_ref[...].astype(jnp.float32), 0.0)        # ReLU (f32 acc)
    s = jnp.sum(x, axis=0, keepdims=True)                       # batch sum
    inv = pl.reciprocal(s + EPSILON, approx=False)               # exact
    o_ref[...] = (x * inv).astype(o_ref.dtype)                  # broadcast mul


def _lane_dense_single_pass(x3, budget, limit, granule, itemsize):
    N, R, _ = x3.shape
    per_sublane_bytes = 4 * N * 128 * itemsize        # in+out, double-buffered
    R_up = _round_up(R, granule)

    # Bytes-based block cap (replaces the old fixed sublane cap).
    tsub_max = max(granule, (budget // per_sublane_bytes) // granule * granule)

    # Shape the grid: >= 2 (ideally >= 4) roughly equal blocks when there is
    # enough work, so both v7x TensorCores get blocks and DMA stays overlapped.
    if tsub_max >= R_up:
        nblocks = 1
    else:
        nblocks = _cdiv(R_up, tsub_max)
        if nblocks % 2:
            nblocks += 1
    if R_up >= 4 * granule:
        nblocks = max(nblocks, 4)
    elif R_up >= 2 * granule:
        nblocks = max(nblocks, 2)

    tsub = _round_up(_cdiv(R_up, nblocks), granule)
    tsub = min(tsub, R_up)
    if tsub >= R:
        tsub = R                                      # full-dim block is legal
    grid = (_cdiv(R, tsub),)

    return pl.pallas_call(
        _norm_kernel,
        out_shape=jax.ShapeDtypeStruct((N, R, 128), x3.dtype),
        grid_spec=pltpu.PrefetchScalarGridSpec(
            num_scalar_prefetch=0,
            grid=grid,
            in_specs=[pl.BlockSpec((N, tsub, 128), lambda i: (0, i, 0))],
            out_specs=pl.BlockSpec((N, tsub, 128), lambda i: (0, i, 0)),
        ),
        compiler_params=pltpu.CompilerParams(
            dimension_semantics=("parallel",),
            vmem_limit_bytes=limit),
    )(x3)


def _lane_dense_two_pass(x3, budget, limit, granule, itemsize):
    """Batch-tiled path for large N: pass 1 reduces over batch tiles into a
    resident f32 accumulator; pass 2 normalizes.  ~1.5x HBM traffic but keeps
    full-size pipelined DMAs instead of blowing past the VMEM budget."""
    N, R, _ = x3.shape
    R_up = _round_up(R, granule)

    # Feature tile: keep the per-column sum block modest; favor big batch tiles.
    tsub = min(R_up, 512)
    tsub = max(granule, (tsub // granule) * granule)
    if tsub >= R:
        tsub = R
    s_block_bytes = tsub * 128 * 4
    # Pass 2 is the tightest fit: 2x x-block + 2x out-block + 2x s-block.
    tn = max(1, (budget - 2 * s_block_bytes) // (4 * tsub * 128 * itemsize))
    tn = min(tn, N)
    grid_r = _cdiv(R, tsub)
    grid_n = _cdiv(N, tn)

    # ---- Pass 1: s[r, l] = sum_n relu(x[n, r, l]) (f32 accumulator). ----
    def _sum_kernel(x_ref, s_ref):
        n = pl.program_id(1)

        @pl.when(n == 0)
        def _():
            s_ref[...] = jnp.zeros_like(s_ref)

        xv = jnp.maximum(x_ref[...].astype(jnp.float32), 0.0)
        if N % tn != 0:
            # Mask garbage batch rows in the ragged tail block.
            row = jax.lax.broadcasted_iota(jnp.int32, xv.shape, 0) + n * tn
            xv = jnp.where(row < N, xv, 0.0)
        s_ref[...] += jnp.sum(xv, axis=0)

    s = pl.pallas_call(
        _sum_kernel,
        out_shape=jax.ShapeDtypeStruct((R, 128), jnp.float32),
        grid_spec=pltpu.PrefetchScalarGridSpec(
            num_scalar_prefetch=0,
            grid=(grid_r, grid_n),                      # reduction axis last
            in_specs=[pl.BlockSpec((tn, tsub, 128), lambda i, n: (n, i, 0))],
            out_specs=pl.BlockSpec((tsub, 128), lambda i, n: (i, 0)),
        ),
        compiler_params=pltpu.CompilerParams(
            dimension_semantics=("parallel", "arbitrary"),
            vmem_limit_bytes=limit),
    )(x3)

    # ---- Pass 2: out = relu(x) / (s + eps). ----
    def _div_kernel(x_ref, s_ref, o_ref):
        xv = jnp.maximum(x_ref[...].astype(jnp.float32), 0.0)
        inv = pl.reciprocal(s_ref[...] + EPSILON, approx=False)
        o_ref[...] = (xv * inv[None, :, :]).astype(o_ref.dtype)

    return pl.pallas_call(
        _div_kernel,
        out_shape=jax.ShapeDtypeStruct((N, R, 128), x3.dtype),
        grid_spec=pltpu.PrefetchScalarGridSpec(
            num_scalar_prefetch=0,
            grid=(grid_r, grid_n),
            in_specs=[pl.BlockSpec((tn, tsub, 128), lambda i, n: (n, i, 0)),
                      pl.BlockSpec((tsub, 128), lambda i, n: (i, 0))],
            out_specs=pl.BlockSpec((tn, tsub, 128), lambda i, n: (n, i, 0)),
        ),
        compiler_params=pltpu.CompilerParams(
            dimension_semantics=("parallel", "parallel"),
            vmem_limit_bytes=limit),
    )(x3, s)


def _lane_dense_forward(x3, budget, limit, granule, itemsize):
    N = x3.shape[0]
    per_sublane_bytes = 4 * N * 128 * itemsize
    if per_sublane_bytes * granule > budget:
        # A minimum-size full-batch block no longer fits: batch-tiled two-pass.
        return _lane_dense_two_pass(x3, budget, limit, granule, itemsize)
    return _lane_dense_single_pass(x3, budget, limit, granule, itemsize)


def norm_forward(x, *, _force_budget=None):
    """x: (N, ...) float -> same shape; relu(x) / (sum over dim 0 + 1e-4)."""
    orig_shape = x.shape
    N = orig_shape[0]
    M = 1
    for d in orig_shape[1:]:
        M *= d
    itemsize = x.dtype.itemsize
    granule = max(8, 32 // itemsize)       # 8 f32 / 16 bf16 / 32 int8-fp8

    budget, limit = _vmem_budget_and_limit()
    if _force_budget is not None:          # testing hook: exercise two-pass path
        budget = int(_force_budget)

    if M % 128 == 0:
        # Lane-dense 3-D layout (N, R, 128); tile only the sublane (R) axis.
        x3 = x.reshape(N, M // 128, 128)
        out = _lane_dense_forward(x3, budget, limit, granule, itemsize)
        return out.reshape(orig_shape)

    per_lane_bytes = 4 * N * itemsize
    if per_lane_bytes * 128 > budget:
        # Large N with a non-lane-multiple feature size: pad to a lane multiple
        # (padded columns are zeros -> relu 0, sum 0, out 0) and run two-pass.
        M_pad = _round_up(M, 128)
        x_pad = jnp.pad(x.reshape(N, M), ((0, 0), (0, M_pad - M)))
        out = _lane_dense_two_pass(x_pad.reshape(N, M_pad // 128, 128),
                                   budget, limit, granule, itemsize)
        return out.reshape(N, M_pad)[:, :M].reshape(orig_shape)

    # Fallback: 2-D (N, M) layout, lane-axis tiling, tail block masked by
    # Pallas (columns are independent so garbage tail lanes never contaminate
    # real outputs, and OOB writes are discarded).
    x2 = x.reshape(N, M)
    M_up = _round_up(M, 128)
    tm_max = max(128, (budget // per_lane_bytes) // 128 * 128)
    if tm_max >= M_up:
        nblocks = 1
    else:
        nblocks = _cdiv(M_up, tm_max)
        if nblocks % 2:
            nblocks += 1
    if M_up >= 4 * 128:
        nblocks = max(nblocks, 4)
    elif M_up >= 2 * 128:
        nblocks = max(nblocks, 2)
    tm = _round_up(_cdiv(M_up, nblocks), 128)
    tm = min(tm, M_up)
    if tm >= M:
        tm = M
    grid = (_cdiv(M, tm),)

    out = pl.pallas_call(
        _norm_kernel,
        out_shape=jax.ShapeDtypeStruct((N, M), x.dtype),
        grid_spec=pltpu.PrefetchScalarGridSpec(
            num_scalar_prefetch=0,
            grid=grid,
            in_specs=[pl.BlockSpec((N, tm), lambda i: (0, i))],
            out_specs=pl.BlockSpec((N, tm), lambda i: (0, i)),
        ),
        compiler_params=pltpu.CompilerParams(
            dimension_semantics=("parallel",),
            vmem_limit_bytes=limit),
    )(x2)
    return out.reshape(orig_shape)


if __name__ == "__main__":
    def _ref(x):
        xr = jnp.maximum(x, 0.0)
        return xr / (jnp.sum(xr, axis=0) + EPSILON)

    # Primary shape implied by the module usage: (N, C, H, W) = (2, 4, 16, 16).
    x = jax.random.normal(jax.random.PRNGKey(0), (2, 4, 16, 16), dtype=jnp.float32)
    out = norm_forward(x)
    jax.block_until_ready(out)
    assert out.shape == x.shape
    assert jnp.allclose(out, _ref(x), atol=1e-6, rtol=1e-6)

    # Fallback path (feature size not a multiple of 128).
    x2 = jax.random.normal(jax.random.PRNGKey(1), (2, 3, 5, 7), dtype=jnp.float32)
    out2 = norm_forward(x2)
    jax.block_until_ready(out2)
    assert jnp.allclose(out2, _ref(x2), atol=1e-6, rtol=1e-6)

    # Batch-tiled two-pass path (forced tiny budget to exercise it at small N).
    x3 = jax.random.normal(jax.random.PRNGKey(2), (8, 4, 16, 16), dtype=jnp.float32)
    out3 = norm_forward(x3, _force_budget=64 * 1024)
    jax.block_until_ready(out3)
    assert jnp.allclose(out3, _ref(x3), atol=1e-6, rtol=1e-6)

    print("KERNEL_OK")
</pallas_src>

<mosaic_0001>
module attributes {stable_mosaic.version = 11 : i64} {
  func.func @_norm_kernel(%arg0: i32, %arg1: memref<2x8x128xf32, #tpu.memory_space<vmem>>, %arg2: memref<2x8x128xf32, #tpu.memory_space<vmem>>) attributes {dimension_semantics = [#tpu.dimension_semantics<parallel>], iteration_bounds = array<i64: 1>, scalar_prefetch = 0 : i64, scratch_operands = 0 : i64, tpu.core_type = #tpu.core_type<tc>, window_params = [{transform_indices = @transform_0, window_bounds = array<i64: 2, 8, 128>}, {transform_indices = @transform_1, window_bounds = array<i64: 2, 8, 128>}]} {
    %c0 = arith.constant 0 : index
    %c0_0 = arith.constant 0 : index
    %c0_1 = arith.constant 0 : index
    %0 = vector.load %arg1[%c0, %c0_0, %c0_1] : memref<2x8x128xf32, #tpu.memory_space<vmem>>, vector<2x8x128xf32>
    %cst = arith.constant 0.000000e+00 : f32
    %1 = vector.broadcast %cst : f32 to vector<2x8x128xf32>
    %2 = arith.maximumf %0, %1 : vector<2x8x128xf32>
    %cst_2 = arith.constant dense<0.000000e+00> : vector<8x128xf32>
    %3 = vector.multi_reduction <add>, %2, %cst_2 [0] : vector<2x8x128xf32> to vector<8x128xf32>
    %4 = vector.shape_cast %3 : vector<8x128xf32> to vector<1x8x128xf32>
    %cst_3 = arith.constant 9.99999974E-5 : f32
    %5 = vector.broadcast %cst_3 : f32 to vector<1x8x128xf32>
    %6 = arith.addf %4, %5 : vector<1x8x128xf32>
    %7 = tpu.reciprocal %6 : vector<1x8x128xf32> -> vector<1x8x128xf32>
    %8 = vector.broadcast %7 : vector<1x8x128xf32> to vector<2x8x128xf32>
    %9 = arith.mulf %2, %8 : vector<2x8x128xf32>
    %c0_4 = arith.constant 0 : index
    %c0_5 = arith.constant 0 : index
    %c0_6 = arith.constant 0 : index
    %10 = vector.load %arg2[%c0_4, %c0_5, %c0_6] : memref<2x8x128xf32, #tpu.memory_space<vmem>>, vector<2x8x128xf32>
    tpu.vector_store %arg2[%c0_4, %c0_5, %c0_6], %9 {strides = array<i32>} : memref<2x8x128xf32, #tpu.memory_space<vmem>>, vector<2x8x128xf32>,
    return
  }
  func.func @transform_0(%arg0: i32) -> (i32, i32, i32) {
    %c0_i32 = arith.constant 0 : i32
    %c0_i32_0 = arith.constant 0 : i32
    %c0_i32_1 = arith.constant 0 : i32
    return %c0_i32, %arg0, %c0_i32_0 : i32, i32, i32
  }
  func.func @transform_1(%arg0: i32) -> (i32, i32, i32) {
    %c0_i32 = arith.constant 0 : i32
    %c0_i32_0 = arith.constant 0 : i32
    %c0_i32_1 = arith.constant 0 : i32
    return %c0_i32, %arg0, %c0_i32_0 : i32, i32, i32
  }
}

</mosaic_0001>

<llo_original>
// kernel: tpu_custom_call.1
$region0: #{tpu_custom_call.1}
  #allocation0 [shape = 'u32[]', space=smem, size = 0x4, offset = 0x4, fixed_abs, tag = 'smem constant byte address 0x4 - core index']
  #allocation1 [shape = 'u32[144,128]{1,0:T(1,128)}', space=vmem, size = 0x12000, scoped, tag = 'internal scratch']
  %s0 = inlined_call_operand.hbm [shape: f32[2,8,128], index: 0, kind: input, shape index: {}]
  %s1 = inlined_call_operand.hbm [shape: f32[2,8,128], index: 1, kind: output, shape index: {}]
  %s2 = sld [smem:[#allocation0]]
  $region18: #{tpu_custom_call.1} parent=0
    _
  %s4 = ssub.s32 1, %s2
  %s5 = scalar_select 0, %s4, %s2
  $region1: #{tpu_custom_call.1} parent=0
    #allocation2 [shape = 'u8[8192]{0}', space=vmem, size = 0x2000, scoped, tag = 'input window, operand 0, single buffered']
    #allocation3 [shape = 's32[1]{0}', space=sflag, size = 0x4, scoped, tag = 'scoped memory for tpu_custom_call.1']
    #allocation4 [shape = 's32[1]{0}', space=sflag, size = 0x4, scoped, tag = 'scoped memory for tpu_custom_call.1']
    #allocation5 [shape = 'u8[8192]{0}', space=vmem, size = 0x2000, scoped, tag = 'output window, operand 0, single buffered']
    %6 = vsyncpa [#allocation3], 0
    %7 = vsyncpa [#allocation4], 0
    // Predicated region
    $region2: #{tpu_custom_call.1} parent=1 // pred_check
      _
    $region3: #{tpu_custom_call.1} parent=1 // pred_check_branch
      %9 = sbr.rel (0) target = $region5
    $region4: #{tpu_custom_call.1} parent=1 // pred_region
      %s11 = ssub.s32 256, 256
      %12 = vsyncadd [#allocation3], %s11
      %s13 = sshll.u32 [#allocation2], 4
      %s14 = int_to_ptr.vmem [resolvable:$true] %s13
      %19 = dma.hbm_to_vmem [thread:$0]  %s0, 256, %s14, [#allocation3], 128, 128, 8
    $region5: #{tpu_custom_call.1} parent=1 // pred_fallthru
      _
    // Predicated region
    $region6: #{tpu_custom_call.1} parent=1 // pred_check
      _
    $region7: #{tpu_custom_call.1} parent=1 // pred_check_branch
      %21 = sbr.rel (0) target = $region9
    $region8: #{tpu_custom_call.1} parent=1 // pred_region
      %22 = dma.done [#allocation3], 256
    $region9: #{tpu_custom_call.1} parent=1 // pred_fallthru
      _
    %v23 = vld [vmem:[#allocation2] sm:$0xff]
    %v24 = vld [vmem:[#allocation2 + $0x8] sm:$0xff]
    %v25 = vmax.f32 %v23, 0.0
    %v26 = vmax.f32 %v24, 0.0
    %v27 = vadd.f32 %v25, %v26
    %v28 = vadd.f32 %v27, 0.0001
    %v29 = vrcp.pop %v28
    %v30 = vmul.f32 %v25, %v29
    %v31 = vmul.f32 %v26, %v29
    %32 = vst [vmem:[#allocation5] sm:$0xff] %v30
    %33 = vst [vmem:[#allocation5 + $0x8] sm:$0xff] %v31
    // Predicated region
    $region10: #{tpu_custom_call.1} parent=1 // pred_check
      _
    $region11: #{tpu_custom_call.1} parent=1 // pred_check_branch
      %35 = sbr.rel (0) target = $region13
    $region12: #{tpu_custom_call.1} parent=1 // pred_region
      %s37 = ssub.s32 256, 256
      %38 = vsyncadd [#allocation4], %s37
      %s39 = sshll.u32 [#allocation5], 4
      %s40 = int_to_ptr.vmem [resolvable:$true] %s39
      %45 = dma.vmem_to_hbm [thread:$0]  %s40, 256, %s1, [#allocation4], 128, 128, 8
    $region13: #{tpu_custom_call.1} parent=1 // pred_fallthru
      _
    // Predicated region
    $region14: #{tpu_custom_call.1} parent=1 // pred_check
      _
    $region15: #{tpu_custom_call.1} parent=1 // pred_check_branch
      %47 = sbr.rel (0) target = $region17
    $region16: #{tpu_custom_call.1} parent=1 // pred_region
      %48 = dma.done [#allocation4], 256
    $region17: #{tpu_custom_call.1} parent=1 // pred_fallthru
      _
    %49 = vsyncpa [#allocation3], 1
    %50 = vsyncpa [#allocation4], 1

</llo_original>
